<compile_context>
chip_gen: v7x
topology: tpu7x:2x2x1
jax: 0.10.0
libtpu: 0.0.40
codegen_flags: <defaults>
</compile_context>

<pallas_src>
import functools

import jax
import jax.numpy as jnp
from jax.experimental import pallas as pl
from jax.experimental.pallas import tpu as pltpu


def _round_up(x: int, m: int) -> int:
    return (x + m - 1) // m * m


def actor_kernel(ma_ref, x_ref, w1_ref, b1_ref, w2_ref, b2_ref, w3_ref, b3_ref, out_ref):
    """One batch tile: out = max_action * tanh(relu(relu(x@W1+b1)@W2+b2)@W3+b3)."""
    x = x_ref[...]  # bf16 (tb, state_dim)

    # bf16 operands on the MXU, f32 accumulation; bias/ReLU in f32.
    h = jnp.maximum(
        jnp.dot(x, w1_ref[...], preferred_element_type=jnp.float32) + b1_ref[...], 0.0)
    h = jnp.maximum(
        jnp.dot(h.astype(jnp.bfloat16), w2_ref[...],
                preferred_element_type=jnp.float32) + b2_ref[...], 0.0)
    a = jnp.dot(h.astype(jnp.bfloat16), w3_ref[...],
                preferred_element_type=jnp.float32) + b3_ref[...]
    out_ref[...] = ma_ref[0, 0] * jnp.tanh(a)


def prepare_actor_params(params):
    """One-time param prep: pad hidden dim to a multiple of 128 (lane-dense
    intermediates) and cast weights to bf16 (MXU-native, half the DMA bytes).
    Biases stay f32 for the f32 accumulate/bias/ReLU path."""
    hidden = params["w1"].shape[1]
    hidden_p = _round_up(max(hidden, 128), 128)
    ph = hidden_p - hidden
    return {
        "w1": jnp.pad(params["w1"], ((0, 0), (0, ph))).astype(jnp.bfloat16),
        "b1": jnp.pad(params["b1"], ((0, 0), (0, ph))),
        "w2": jnp.pad(params["w2"], ((0, ph), (0, ph))).astype(jnp.bfloat16),
        "b2": jnp.pad(params["b2"], ((0, 0), (0, ph))),
        "w3": jnp.pad(params["w3"], ((0, ph), (0, 0))).astype(jnp.bfloat16),
        "b3": params["b3"],
    }


@functools.partial(jax.jit, static_argnames=("tb",))
def actor_forward(state, prep, max_action, tb: int = 2048):
    """state: (B, state_dim) f32.  prep: output of prepare_actor_params."""
    B, state_dim = state.shape
    hidden_p = prep["w1"].shape[1]
    action_dim = prep["w3"].shape[1]

    # Batch tile: multiple of 8 sublanes; keep >= 2 tiles when possible so
    # both TensorCores on v7x get work.
    tb = _round_up(max(tb, 8), 8)
    tb = max(8, min(tb, _round_up(pl.cdiv(B, 2), 8)))
    grid = (pl.cdiv(B, tb),)

    x_bf16 = state.astype(jnp.bfloat16)              # input DMA moves bf16
    ma = jnp.full((1, 1), max_action, dtype=jnp.float32)

    flops = 2 * B * (state_dim * hidden_p + hidden_p * hidden_p + hidden_p * action_dim)
    bytes_accessed = (
        B * state_dim * 2                                   # bf16 state in
        + (prep["w1"].size + prep["w2"].size + prep["w3"].size) * 2   # bf16 weights
        + (prep["b1"].size + prep["b2"].size + prep["b3"].size) * 4   # f32 biases
        + B * action_dim * 4                                 # f32 actions out
    )

    return pl.pallas_call(
        actor_kernel,
        out_shape=jax.ShapeDtypeStruct((B, action_dim), jnp.float32),
        grid=grid,
        in_specs=[
            # max_action scalar lives in SMEM (whole array, no blocking).
            pl.BlockSpec(memory_space=pltpu.MemorySpace.SMEM),
            # Streamed bf16 batch tile of the state.
            pl.BlockSpec((tb, state_dim), lambda i: (i, 0)),
            # Weights / biases: constant block index -> VMEM-resident across tiles.
            pl.BlockSpec((state_dim, hidden_p), lambda i: (0, 0)),
            pl.BlockSpec((1, hidden_p), lambda i: (0, 0)),
            pl.BlockSpec((hidden_p, hidden_p), lambda i: (0, 0)),
            pl.BlockSpec((1, hidden_p), lambda i: (0, 0)),
            pl.BlockSpec((hidden_p, action_dim), lambda i: (0, 0)),
            pl.BlockSpec((1, action_dim), lambda i: (0, 0)),
        ],
        out_specs=pl.BlockSpec((tb, action_dim), lambda i: (i, 0)),
        compiler_params=pltpu.CompilerParams(
            dimension_semantics=("parallel",),   # megacore batch sharding on v7x
        ),
        cost_estimate=pl.CostEstimate(
            flops=flops,
            transcendentals=B * action_dim,
            bytes_accessed=bytes_accessed,
        ),
    )(ma, x_bf16,
      prep["w1"], prep["b1"],
      prep["w2"], prep["b2"],
      prep["w3"], prep["b3"])


def actor_reference(state, params, max_action):
    """Plain-JAX f32 reference matching the PyTorch forward."""
    h = jnp.maximum(state @ params["w1"] + params["b1"], 0.0)
    h = jnp.maximum(h @ params["w2"] + params["b2"], 0.0)
    return max_action * jnp.tanh(h @ params["w3"] + params["b3"])


def init_actor_params(key, state_dim: int, action_dim: int, hidden_dim: int):
    """Mirror PyTorch weight_init: orthogonal weights, zero biases.

    PyTorch stores Linear weight as (out, in); we store (in, out) for x @ W.
    """
    k1, k2, k3 = jax.random.split(key, 3)
    ortho = jax.nn.initializers.orthogonal()
    w1 = ortho(k1, (hidden_dim, state_dim), jnp.float32).T
    w2 = ortho(k2, (hidden_dim, hidden_dim), jnp.float32).T
    w3 = ortho(k3, (action_dim, hidden_dim), jnp.float32).T
    return {
        "w1": w1, "b1": jnp.zeros((1, hidden_dim), jnp.float32),
        "w2": w2, "b2": jnp.zeros((1, hidden_dim), jnp.float32),
        "w3": w3, "b3": jnp.zeros((1, action_dim), jnp.float32),
    }


if __name__ == "__main__":
    state_dim = 16
    action_dim = 8
    hidden_dim = 32
    max_action = 2.0

    key = jax.random.PRNGKey(0)
    k_params, k_state1, k_state2 = jax.random.split(key, 3)
    params = init_actor_params(k_params, state_dim, action_dim, hidden_dim)
    prep = jax.tree_util.tree_map(jax.block_until_ready, prepare_actor_params(params))

    # Case 1: tiny inference-style batch (batch < tile; single grid step, ragged block).
    state_small = jax.random.normal(k_state1, (2, state_dim), dtype=jnp.float32)
    out_small = jax.block_until_ready(actor_forward(state_small, prep, max_action))
    ref_small = actor_reference(state_small, params, max_action)
    assert out_small.shape == (2, action_dim)
    assert jnp.allclose(out_small, ref_small, atol=2e-2, rtol=2e-2)

    # Case 2: batch not divisible by the tile -> multi-tile grid + masked last block.
    state_big = jax.random.normal(k_state2, (300, state_dim), dtype=jnp.float32)
    out_big = jax.block_until_ready(actor_forward(state_big, prep, max_action, tb=128))
    ref_big = actor_reference(state_big, params, max_action)
    assert out_big.shape == (300, action_dim)
    assert jnp.allclose(out_big, ref_big, atol=2e-2, rtol=2e-2)

    print("KERNEL_OK")
</pallas_src>

<mosaic_0001>
module attributes {stable_mosaic.version = 11 : i64} {
  func.func @actor_kernel(%arg0: i32, %arg1: memref<1x1xf32, #tpu.memory_space<smem>>, %arg2: memref<8x16xbf16, #tpu.memory_space<vmem>>, %arg3: memref<16x128xbf16, #tpu.memory_space<vmem>>, %arg4: memref<1x128xf32, #tpu.memory_space<vmem>>, %arg5: memref<128x128xbf16, #tpu.memory_space<vmem>>, %arg6: memref<1x128xf32, #tpu.memory_space<vmem>>, %arg7: memref<128x8xbf16, #tpu.memory_space<vmem>>, %arg8: memref<1x8xf32, #tpu.memory_space<vmem>>, %arg9: memref<8x8xf32, #tpu.memory_space<vmem>>) attributes {dimension_semantics = [#tpu.dimension_semantics<parallel>], iteration_bounds = array<i64: 1>, scalar_prefetch = 0 : i64, scratch_operands = 0 : i64, tpu.core_type = #tpu.core_type<tc>, window_params = [{transform_indices = @transform_0, window_bounds = array<i64: 1, 1>}, {transform_indices = @transform_1, window_bounds = array<i64: 8, 16>}, {pipeline_mode = #tpu.pipeline_mode<synchronous>, transform_indices = @transform_2, window_bounds = array<i64: 16, 128>}, {pipeline_mode = #tpu.pipeline_mode<synchronous>, transform_indices = @transform_3, window_bounds = array<i64: 1, 128>}, {pipeline_mode = #tpu.pipeline_mode<synchronous>, transform_indices = @transform_4, window_bounds = array<i64: 128, 128>}, {pipeline_mode = #tpu.pipeline_mode<synchronous>, transform_indices = @transform_5, window_bounds = array<i64: 1, 128>}, {pipeline_mode = #tpu.pipeline_mode<synchronous>, transform_indices = @transform_6, window_bounds = array<i64: 128, 8>}, {pipeline_mode = #tpu.pipeline_mode<synchronous>, transform_indices = @transform_7, window_bounds = array<i64: 1, 8>}, {transform_indices = @transform_8, window_bounds = array<i64: 8, 8>}]} {
    %c0 = arith.constant 0 : index
    %c0_0 = arith.constant 0 : index
    %0 = vector.load %arg2[%c0, %c0_0] : memref<8x16xbf16, #tpu.memory_space<vmem>>, vector<8x16xbf16>
    %c0_1 = arith.constant 0 : index
    %c0_2 = arith.constant 0 : index
    %1 = vector.load %arg3[%c0_1, %c0_2] : memref<16x128xbf16, #tpu.memory_space<vmem>>, vector<16x128xbf16>
    %cst = arith.constant dense<0.000000e+00> : vector<8x128xf32>
    %2 = tpu.matmul %0, %1, %cst {dimension_numbers = #tpu.dot_dimension_numbers<[1], [0], [0], [1], [0, 0, 1, 1], [], []>} : vector<8x16xbf16>, vector<16x128xbf16>, vector<8x128xf32> -> vector<8x128xf32>
    %c0_3 = arith.constant 0 : index
    %c0_4 = arith.constant 0 : index
    %3 = vector.load %arg4[%c0_3, %c0_4] : memref<1x128xf32, #tpu.memory_space<vmem>>, vector<1x128xf32>
    %4 = vector.broadcast %3 : vector<1x128xf32> to vector<8x128xf32>
    %5 = arith.addf %2, %4 : vector<8x128xf32>
    %cst_5 = arith.constant 0.000000e+00 : f32
    %6 = vector.broadcast %cst_5 : f32 to vector<8x128xf32>
    %7 = arith.maximumf %5, %6 : vector<8x128xf32>
    %8 = arith.truncf %7 : vector<8x128xf32> to vector<8x128xbf16>
    %c0_6 = arith.constant 0 : index
    %c0_7 = arith.constant 0 : index
    %9 = vector.load %arg5[%c0_6, %c0_7] : memref<128x128xbf16, #tpu.memory_space<vmem>>, vector<128x128xbf16>
    %cst_8 = arith.constant dense<0.000000e+00> : vector<8x128xf32>
    %10 = tpu.matmul %8, %9, %cst_8 {dimension_numbers = #tpu.dot_dimension_numbers<[1], [0], [0], [1], [0, 0, 1, 1], [], []>} : vector<8x128xbf16>, vector<128x128xbf16>, vector<8x128xf32> -> vector<8x128xf32>
    %c0_9 = arith.constant 0 : index
    %c0_10 = arith.constant 0 : index
    %11 = vector.load %arg6[%c0_9, %c0_10] : memref<1x128xf32, #tpu.memory_space<vmem>>, vector<1x128xf32>
    %12 = vector.broadcast %11 : vector<1x128xf32> to vector<8x128xf32>
    %13 = arith.addf %10, %12 : vector<8x128xf32>
    %cst_11 = arith.constant 0.000000e+00 : f32
    %14 = vector.broadcast %cst_11 : f32 to vector<8x128xf32>
    %15 = arith.maximumf %13, %14 : vector<8x128xf32>
    %16 = arith.truncf %15 : vector<8x128xf32> to vector<8x128xbf16>
    %c0_12 = arith.constant 0 : index
    %c0_13 = arith.constant 0 : index
    %17 = vector.load %arg7[%c0_12, %c0_13] : memref<128x8xbf16, #tpu.memory_space<vmem>>, vector<128x8xbf16>
    %cst_14 = arith.constant dense<0.000000e+00> : vector<8x8xf32>
    %18 = tpu.matmul %16, %17, %cst_14 {dimension_numbers = #tpu.dot_dimension_numbers<[1], [0], [0], [1], [0, 0, 1, 1], [], []>} : vector<8x128xbf16>, vector<128x8xbf16>, vector<8x8xf32> -> vector<8x8xf32>
    %c0_15 = arith.constant 0 : index
    %c0_16 = arith.constant 0 : index
    %19 = vector.load %arg8[%c0_15, %c0_16] : memref<1x8xf32, #tpu.memory_space<vmem>>, vector<1x8xf32>
    %20 = vector.broadcast %19 : vector<1x8xf32> to vector<8x8xf32>
    %21 = arith.addf %18, %20 : vector<8x8xf32>
    %c0_17 = arith.constant 0 : index
    %c0_18 = arith.constant 0 : index
    %22 = memref.load %arg1[%c0_17, %c0_18] : memref<1x1xf32, #tpu.memory_space<smem>>
    %23 = math.tanh %21 : vector<8x8xf32>
    %24 = vector.broadcast %22 : f32 to vector<8x8xf32>
    %25 = arith.mulf %24, %23 : vector<8x8xf32>
    %c0_19 = arith.constant 0 : index
    %c0_20 = arith.constant 0 : index
    %26 = vector.load %arg9[%c0_19, %c0_20] : memref<8x8xf32, #tpu.memory_space<vmem>>, vector<8x8xf32>
    tpu.vector_store %arg9[%c0_19, %c0_20], %25 {strides = array<i32>} : memref<8x8xf32, #tpu.memory_space<vmem>>, vector<8x8xf32>,
    return
  }
  func.func @transform_0(%arg0: i32) -> (i32, i32) {
    %c0_i32 = arith.constant 0 : i32
    %c0_i32_0 = arith.constant 0 : i32
    %c0_i32_1 = arith.constant 0 : i32
    return %c0_i32, %c0_i32_0 : i32, i32
  }
  func.func @transform_1(%arg0: i32) -> (i32, i32) {
    %c0_i32 = arith.constant 0 : i32
    %c0_i32_0 = arith.constant 0 : i32
    return %arg0, %c0_i32 : i32, i32
  }
  func.func @transform_2(%arg0: i32) -> (i32, i32) {
    %c0_i32 = arith.constant 0 : i32
    %c0_i32_0 = arith.constant 0 : i32
    %c0_i32_1 = arith.constant 0 : i32
    return %c0_i32, %c0_i32_0 : i32, i32
  }
  func.func @transform_3(%arg0: i32) -> (i32, i32) {
    %c0_i32 = arith.constant 0 : i32
    %c0_i32_0 = arith.constant 0 : i32
    %c0_i32_1 = arith.constant 0 : i32
    return %c0_i32, %c0_i32_0 : i32, i32
  }
  func.func @transform_4(%arg0: i32) -> (i32, i32) {
    %c0_i32 = arith.constant 0 : i32
    %c0_i32_0 = arith.constant 0 : i32
    %c0_i32_1 = arith.constant 0 : i32
    return %c0_i32, %c0_i32_0 : i32, i32
  }
  func.func @transform_5(%arg0: i32) -> (i32, i32) {
    %c0_i32 = arith.constant 0 : i32
    %c0_i32_0 = arith.constant 0 : i32
    %c0_i32_1 = arith.constant 0 : i32
    return %c0_i32, %c0_i32_0 : i32, i32
  }
  func.func @transform_6(%arg0: i32) -> (i32, i32) {
    %c0_i32 = arith.constant 0 : i32
    %c0_i32_0 = arith.constant 0 : i32
    %c0_i32_1 = arith.constant 0 : i32
    return %c0_i32, %c0_i32_0 : i32, i32
  }
  func.func @transform_7(%arg0: i32) -> (i32, i32) {
    %c0_i32 = arith.constant 0 : i32
    %c0_i32_0 = arith.constant 0 : i32
    %c0_i32_1 = arith.constant 0 : i32
    return %c0_i32, %c0_i32_0 : i32, i32
  }
  func.func @transform_8(%arg0: i32) -> (i32, i32) {
    %c0_i32 = arith.constant 0 : i32
    %c0_i32_0 = arith.constant 0 : i32
    return %arg0, %c0_i32 : i32, i32
  }
}

</mosaic_0001>

<llo_original>
// kernel: actor_forward.1
$region0: #{actor_forward.1}
  #allocation0 [shape = 'u32[]', space=smem, size = 0x4, offset = 0x4, fixed_abs, tag = 'smem constant byte address 0x4 - core index']
  #allocation1 [shape = 'u32[144,128]{1,0:T(1,128)}', space=vmem, size = 0x12000, scoped, tag = 'internal scratch']
  #allocation2 [shape = 'f32[1,1]{1,0:T(1,128)S(6)}', space=smem, size = 0x200, scoped, tag = 'scoped memory for actor_forward.1']
  %s0 = inlined_call_operand.<no memory space> [shape: f32[1,1], index: 0, kind: input, shape index: {}]
  %s1 = inlined_call_operand.vmem [shape: bf16[2,16], index: 1, kind: input, shape index: {}]
  %s2 = inlined_call_operand.vmem [shape: bf16[16,128], index: 2, kind: input, shape index: {}]
  %s3 = inlined_call_operand.vmem [shape: f32[1,128], index: 3, kind: input, shape index: {}]
  %s4 = inlined_call_operand.vmem [shape: bf16[128,128], index: 4, kind: input, shape index: {}]
  %s5 = inlined_call_operand.vmem [shape: f32[1,128], index: 5, kind: input, shape index: {}]
  %s6 = inlined_call_operand.vmem [shape: bf16[128,8], index: 6, kind: input, shape index: {}]
  %s7 = inlined_call_operand.vmem [shape: f32[1,8], index: 7, kind: input, shape index: {}]
  %s8 = inlined_call_operand.hbm [shape: f32[2,8], index: 8, kind: output, shape index: {}]
  %s9 = sld [smem:[#allocation0]]
  $region42: #{actor_forward.1} parent=0
    _
  %s11 = ssub.s32 1, %s9
  %s12 = scalar_select 0, %s11, %s9
  %13 = sst [smem:[#allocation2]] %s0
  $region1: #{actor_forward.1} parent=0
    #allocation3 [shape = 'u8[4096]{0}', space=vmem, size = 0x1000, scoped, tag = 'output window, operand 0, single buffered']
    #allocation4 [shape = 's32[1]{0}', space=sflag, size = 0x4, scoped, tag = 'scoped memory for actor_forward.1']
    %14 = vsyncpa [#allocation4], 0
    // Predicated region
    $region2: #{actor_forward.1} parent=1 // pred_check
      _
    $region3: #{actor_forward.1} parent=1 // pred_check_branch
      %16 = sbr.rel (0) target = $region5
    $region4: #{actor_forward.1} parent=1 // pred_region
      _
    $region5: #{actor_forward.1} parent=1 // pred_fallthru
      _
    // Predicated region
    $region6: #{actor_forward.1} parent=1 // pred_check
      _
    $region7: #{actor_forward.1} parent=1 // pred_check_branch
      %18 = sbr.rel (0) target = $region9
    $region8: #{actor_forward.1} parent=1 // pred_region
      _
    $region9: #{actor_forward.1} parent=1 // pred_fallthru
      _
    // Predicated region
    $region10: #{actor_forward.1} parent=1 // pred_check
      _
    $region11: #{actor_forward.1} parent=1 // pred_check_branch
      %20 = sbr.rel (0) target = $region13
    $region12: #{actor_forward.1} parent=1 // pred_region
      _
    $region13: #{actor_forward.1} parent=1 // pred_fallthru
      _
    // Predicated region
    $region14: #{actor_forward.1} parent=1 // pred_check
      _
    $region15: #{actor_forward.1} parent=1 // pred_check_branch
      %22 = sbr.rel (0) target = $region17
    $region16: #{actor_forward.1} parent=1 // pred_region
      _
    $region17: #{actor_forward.1} parent=1 // pred_fallthru
      _
    // Predicated region
    $region18: #{actor_forward.1} parent=1 // pred_check
      _
    $region19: #{actor_forward.1} parent=1 // pred_check_branch
      %24 = sbr.rel (0) target = $region21
    $region20: #{actor_forward.1} parent=1 // pred_region
      _
    $region21: #{actor_forward.1} parent=1 // pred_fallthru
      _
    // Predicated region
    $region22: #{actor_forward.1} parent=1 // pred_check
      _
    $region23: #{actor_forward.1} parent=1 // pred_check_branch
      %26 = sbr.rel (0) target = $region25
    $region24: #{actor_forward.1} parent=1 // pred_region
      _
    $region25: #{actor_forward.1} parent=1 // pred_fallthru
      _
    // Predicated region
    $region26: #{actor_forward.1} parent=1 // pred_check
      _
    $region27: #{actor_forward.1} parent=1 // pred_check_branch
      %28 = sbr.rel (0) target = $region29
    $region28: #{actor_forward.1} parent=1 // pred_region
      _
    $region29: #{actor_forward.1} parent=1 // pred_fallthru
      _
    // Predicated region
    $region30: #{actor_forward.1} parent=1 // pred_check
      _
    $region31: #{actor_forward.1} parent=1 // pred_check_branch
      %30 = sbr.rel (0) target = $region33
    $region32: #{actor_forward.1} parent=1 // pred_region
      _
    $region33: #{actor_forward.1} parent=1 // pred_fallthru
      _
    %v32 = vld [vmem:[%s1] sm:$0x1]
    %v33 = vld [vmem:[%s1 + $0x1] sm:$0x1]
    %v34 = vld [vmem:[%s1 + $0x2] sm:$0x1]
    %v35 = vld [vmem:[%s1 + $0x3] sm:$0x1]
    %v36 = vld [vmem:[%s2] sm:$0xf]
    %v37 = vld [vmem:[%s2 + $0x4] sm:$0xf]
    %v38 = vld [vmem:[%s3] sm:$0x1]
    %v40 = vlaneseq
    %v41 = vshrl.u32 %v40, 7
    %v42 = vsub.s32 0, %v41
    %v43 = vrot.slane %v38, %v42
    %v49 = vcombine.low %v32, %v33
    %v50 = vcombine.low %v34, %v35
    %v52 = vunpack.c.l.s4 1966171168
    %v53 = vunpack.c.0.s8 %v52
    %v54 = vlaneseq
    %v55 = vshrl.u32 %v54, 7
    %v56 = vsub.s32 %v53, %v55
    %v57 = vrot.slane %v49, %v56
    %v59 = vunpack.c.l.s4 1966171168
    %v60 = vunpack.c.0.s8 %v59
    %v61 = vlaneseq
    %v62 = vshrl.u32 %v61, 7
    %v63 = vsub.s32 %v60, %v62
    %v64 = vrot.slane %v50, %v63
    %v65 = vcombine.low %v57, %v64
    %v67 = vunpack.c.l.s4 1966171168
    %v68 = vunpack.c.0.s8 %v67
    %v69 = vlaneseq
    %v70 = vshrl.u32 %v69, 7
    %v71 = vsub.s32 %v68, %v70
    %v72 = vrot.slane %v65, %v71
    %v75 = vunpack.c.l.b16 %v36
    %v76 = vunpack.c.l.b16 %v37
    %v77 = vpack.c.b16 %v76, %v75
    %vm79 = vcmask 130048
    %v81 = vsel %vm79, %v72, 0
    %83 = vmatprep.subr.bf16.mxu0 0
    %84 = vmatpush1.bf16.msra.mxu0 %v77
    %85 = vmatprep.subr.bf16.mxu0 0
    %86 = vmatpush1.bf16.msra.mxu0 0
    %87 = vmatprep.subr.bf16.mxu0 0
    %88 = vmatpush1.bf16.msra.mxu0 0
    %89 = vmatprep.subr.bf16.mxu0 0
    %90 = vmatpush1.bf16.msra.mxu0 0
    %91 = vmatprep.subr.bf16.mxu0 0
    %92 = vmatpush1.bf16.msra.mxu0 0
    %93 = vmatprep.subr.bf16.mxu0 0
    %94 = vmatpush1.bf16.msra.mxu0 0
    %95 = vmatprep.subr.bf16.mxu0 0
    %96 = vmatpush1.bf16.msra.mxu0 0
    %97 = vmatprep.subr.bf16.mxu0 0
    %98 = vmatpush1.bf16.msra.mxu0 0
    %99 = vmatprep.subr.bf16.mxu0 0
    %100 = vmatpush1.bf16.msra.mxu0 0
    %101 = vmatprep.subr.bf16.mxu0 0
    %102 = vmatpush1.bf16.msra.mxu0 0
    %103 = vmatprep.subr.bf16.mxu0 0
    %104 = vmatpush1.bf16.msra.mxu0 0
    %105 = vmatprep.subr.bf16.mxu0 0
    %106 = vmatpush1.bf16.msra.mxu0 0
    %107 = vmatprep.subr.bf16.mxu0 0
    %108 = vmatpush1.bf16.msra.mxu0 0
    %109 = vmatprep.subr.bf16.mxu0 0
    %110 = vmatpush1.bf16.msra.mxu0 0
    %111 = vmatprep.subr.bf16.mxu0 0
    %112 = vmatpush1.bf16.msra.mxu0 0
    %113 = vmatprep.subr.bf16.mxu0 0
    %114 = vmatpush1.bf16.msra.mxu0 0
    %115 = vmatprep.mubr.bf16.mxu0 0
    %116 = vmatmul.mubr.bf16.gmra.mrb[0].mxu0 %v81
    %v117 = vpop.f32.mrb[0].mxu0
    %v118 = vadd.f32 %v43, %v117
    %v119 = vpop.f32.mrb[0].mxu0
    %v120 = vpop.f32.mrb[0].mxu0
    %v121 = vpop.f32.mrb[0].mxu0
    %122 = vdwg.mxu0
    %v123 = vmax.f32 %v118, 0.0
    %v124 = vpack.c.bf16 %v123, %v123
    %v125 = vld [vmem:[%s4] sm:$0xf]
    %v126 = vld [vmem:[%s4 + $0x4] sm:$0xf]
    %v127 = vld [vmem:[%s4 + $0x8] sm:$0xf]
    %v128 = vld [vmem:[%s4 + $0xc] sm:$0xf]
    %v129 = vld [vmem:[%s4 + $0x10] sm:$0xf]
    %v130 = vld [vmem:[%s4 + $0x14] sm:$0xf]
    %v131 = vld [vmem:[%s4 + $0x18] sm:$0xf]
    %v132 = vld [vmem:[%s4 + $0x1c] sm:$0xf]
    %v133 = vld [vmem:[%s4 + $0x20] sm:$0xf]
    %v134 = vld [vmem:[%s4 + $0x24] sm:$0xf]
    %v135 = vld [vmem:[%s4 + $0x28] sm:$0xf]
    %v136 = vld [vmem:[%s4 + $0x2c] sm:$0xf]
    %v137 = vld [vmem:[%s4 + $0x30] sm:$0xf]
    %v138 = vld [vmem:[%s4 + $0x34] sm:$0xf]
    %v139 = vld [vmem:[%s4 + $0x38] sm:$0xf]
    %v140 = vld [vmem:[%s4 + $0x3c] sm:$0xf]
    %v141 = vld [vmem:[%s5] sm:$0x1]
    %v143 = vlaneseq
    %v144 = vshrl.u32 %v143, 7
    %v145 = vsub.s32 0, %v144
    %v146 = vrot.slane %v141, %v145
    %v164 = vunpack.c.l.b16 %v125
    %v165 = vunpack.c.l.b16 %v126
    %v166 = vunpack.c.l.b16 %v127
    %v167 = vunpack.c.l.b16 %v128
    %v168 = vunpack.c.l.b16 %v129
    %v169 = vunpack.c.l.b16 %v130
    %v170 = vunpack.c.l.b16 %v131
    %v171 = vunpack.c.l.b16 %v132
    %v172 = vunpack.c.l.b16 %v133
    %v173 = vunpack.c.l.b16 %v134
    %v174 = vunpack.c.l.b16 %v135
    %v175 = vunpack.c.l.b16 %v136
    %v176 = vunpack.c.l.b16 %v137
    %v177 = vunpack.c.l.b16 %v138
    %v178 = vunpack.c.l.b16 %v139
    %v179 = vunpack.c.l.b16 %v140
    %v180 = vpack.c.b16 %v165, %v164
    %v181 = vpack.c.b16 %v167, %v166
    %v182 = vpack.c.b16 %v169, %v168
    %v183 = vpack.c.b16 %v171, %v170
    %v184 = vpack.c.b16 %v173, %v172
    %v185 = vpack.c.b16 %v175, %v174
    %v186 = vpack.c.b16 %v177, %v176
    %v187 = vpack.c.b16 %v179, %v178
    %196 = vmatprep.subr.bf16.mxu0 0
    %197 = vmatpush1.bf16.msra.mxu0 %v180
    %198 = vmatprep.subr.bf16.mxu0 0
    %199 = vmatpush1.bf16.msra.mxu0 %v181
    %200 = vmatprep.subr.bf16.mxu0 0
    %201 = vmatpush1.bf16.msra.mxu0 %v182
    %202 = vmatprep.subr.bf16.mxu0 0
    %203 = vmatpush1.bf16.msra.mxu0 %v183
    %204 = vmatprep.subr.bf16.mxu0 0
    %205 = vmatpush1.bf16.msra.mxu0 %v184
    %206 = vmatprep.subr.bf16.mxu0 0
    %207 = vmatpush1.bf16.msra.mxu0 %v185
    %208 = vmatprep.subr.bf16.mxu0 0
    %209 = vmatpush1.bf16.msra.mxu0 %v186
    %210 = vmatprep.subr.bf16.mxu0 0
    %211 = vmatpush1.bf16.msra.mxu0 %v187
    %212 = vmatprep.subr.bf16.mxu0 0
    %213 = vmatpush1.bf16.msra.mxu0 0
    %214 = vmatprep.subr.bf16.mxu0 0
    %215 = vmatpush1.bf16.msra.mxu0 0
    %216 = vmatprep.subr.bf16.mxu0 0
    %217 = vmatpush1.bf16.msra.mxu0 0
    %218 = vmatprep.subr.bf16.mxu0 0
    %219 = vmatpush1.bf16.msra.mxu0 0
    %220 = vmatprep.subr.bf16.mxu0 0
    %221 = vmatpush1.bf16.msra.mxu0 0
    %222 = vmatprep.subr.bf16.mxu0 0
    %223 = vmatpush1.bf16.msra.mxu0 0
    %224 = vmatprep.subr.bf16.mxu0 0
    %225 = vmatpush1.bf16.msra.mxu0 0
    %226 = vmatprep.subr.bf16.mxu0 0
    %227 = vmatpush1.bf16.msra.mxu0 0
    %228 = vmatprep.mubr.bf16.mxu0 0
    %229 = vmatmul.mubr.bf16.gmra.mrb[0].mxu0 %v124
    %v230 = vpop.f32.mrb[0].mxu0
    %v231 = vadd.f32 %v146, %v230
    %v232 = vpop.f32.mrb[0].mxu0
    %v233 = vpop.f32.mrb[0].mxu0
    %v234 = vpop.f32.mrb[0].mxu0
    %235 = vdwg.mxu0
    %v236 = vmax.f32 %v231, 0.0
    %v237 = vpack.c.bf16 %v236, %v236
    %v238 = vld [vmem:[%s6] sm:$0xf]
    %v239 = vld [vmem:[%s6 + $0x4] sm:$0xf]
    %v240 = vld [vmem:[%s6 + $0x8] sm:$0xf]
    %v241 = vld [vmem:[%s6 + $0xc] sm:$0xf]
    %v242 = vld [vmem:[%s6 + $0x10] sm:$0xf]
    %v243 = vld [vmem:[%s6 + $0x14] sm:$0xf]
    %v244 = vld [vmem:[%s6 + $0x18] sm:$0xf]
    %v245 = vld [vmem:[%s6 + $0x1c] sm:$0xf]
    %v246 = vld [vmem:[%s6 + $0x20] sm:$0xf]
    %v247 = vld [vmem:[%s6 + $0x24] sm:$0xf]
    %v248 = vld [vmem:[%s6 + $0x28] sm:$0xf]
    %v249 = vld [vmem:[%s6 + $0x2c] sm:$0xf]
    %v250 = vld [vmem:[%s6 + $0x30] sm:$0xf]
    %v251 = vld [vmem:[%s6 + $0x34] sm:$0xf]
    %v252 = vld [vmem:[%s6 + $0x38] sm:$0xf]
    %v253 = vld [vmem:[%s6 + $0x3c] sm:$0xf]
    %v254 = vld [vmem:[%s7] sm:$0x1]
    %v256 = vlaneseq
    %v257 = vshrl.u32 %v256, 7
    %v258 = vsub.s32 0, %v257
    %v259 = vrot.slane %v254, %v258
    %v277 = vunpack.c.l.b16 %v238
    %v278 = vunpack.c.l.b16 %v239
    %v279 = vunpack.c.l.b16 %v240
    %v280 = vunpack.c.l.b16 %v241
    %v281 = vunpack.c.l.b16 %v242
    %v282 = vunpack.c.l.b16 %v243
    %v283 = vunpack.c.l.b16 %v244
    %v284 = vunpack.c.l.b16 %v245
    %v285 = vunpack.c.l.b16 %v246
    %v286 = vunpack.c.l.b16 %v247
    %v287 = vunpack.c.l.b16 %v248
    %v288 = vunpack.c.l.b16 %v249
    %v289 = vunpack.c.l.b16 %v250
    %v290 = vunpack.c.l.b16 %v251
    %v291 = vunpack.c.l.b16 %v252
    %v292 = vunpack.c.l.b16 %v253
    %v293 = vpack.c.b16 %v278, %v277
    %v294 = vpack.c.b16 %v280, %v279
    %v295 = vpack.c.b16 %v282, %v281
    %v296 = vpack.c.b16 %v284, %v283
    %v297 = vpack.c.b16 %v286, %v285
    %v298 = vpack.c.b16 %v288, %v287
    %v299 = vpack.c.b16 %v290, %v289
    %v300 = vpack.c.b16 %v292, %v291
    %309 = vmatprep.subr.bf16.mxu0 0
    %310 = vmatpush1.bf16.msra.mxu0 %v293
    %311 = vmatprep.subr.bf16.mxu0 0
    %312 = vmatpush1.bf16.msra.mxu0 %v294
    %313 = vmatprep.subr.bf16.mxu0 0
    %314 = vmatpush1.bf16.msra.mxu0 %v295
    %315 = vmatprep.subr.bf16.mxu0 0
    %316 = vmatpush1.bf16.msra.mxu0 %v296
    %317 = vmatprep.subr.bf16.mxu0 0
    %318 = vmatpush1.bf16.msra.mxu0 %v297
    %319 = vmatprep.subr.bf16.mxu0 0
    %320 = vmatpush1.bf16.msra.mxu0 %v298
    %321 = vmatprep.subr.bf16.mxu0 0
    %322 = vmatpush1.bf16.msra.mxu0 %v299
    %323 = vmatprep.subr.bf16.mxu0 0
    %324 = vmatpush1.bf16.msra.mxu0 %v300
    %325 = vmatprep.subr.bf16.mxu0 0
    %326 = vmatpush1.bf16.msra.mxu0 0
    %327 = vmatprep.subr.bf16.mxu0 0
    %328 = vmatpush1.bf16.msra.mxu0 0
    %329 = vmatprep.subr.bf16.mxu0 0
    %330 = vmatpush1.bf16.msra.mxu0 0
    %331 = vmatprep.subr.bf16.mxu0 0
    %332 = vmatpush1.bf16.msra.mxu0 0
    %333 = vmatprep.subr.bf16.mxu0 0
    %334 = vmatpush1.bf16.msra.mxu0 0
    %335 = vmatprep.subr.bf16.mxu0 0
    %336 = vmatpush1.bf16.msra.mxu0 0
    %337 = vmatprep.subr.bf16.mxu0 0
    %338 = vmatpush1.bf16.msra.mxu0 0
    %339 = vmatprep.subr.bf16.mxu0 0
    %340 = vmatpush1.bf16.msra.mxu0 0
    %341 = vmatprep.mubr.bf16.mxu0 0
    %342 = vmatmul.mubr.bf16.gmra.mrb[0].mxu0 %v237
    %v343 = vpop.f32.mrb[0].mxu0
    %v344 = vadd.f32 %v259, %v343
    %v345 = vpop.f32.mrb[0].mxu0
    %v346 = vpop.f32.mrb[0].mxu0
    %v347 = vpop.f32.mrb[0].mxu0
    %348 = vdwg.mxu0
    %s349 = sld [smem:[#allocation2]]
    %v350 = vtanh.pop %v344
    %v351 = vstv %s349
    %v352 = vmul.f32 %v351, %v350
    %vm353 = vcmask 64512
    %354 = vst.msk [vmem:[#allocation3] sm:$0xff] %vm353, %v352
    // Predicated region
    $region34: #{actor_forward.1} parent=1 // pred_check
      _
    $region35: #{actor_forward.1} parent=1 // pred_check_branch
      %356 = sbr.rel (0) target = $region37
    $region36: #{actor_forward.1} parent=1 // pred_region
      %s358 = ssub.s32 128, 32
      %359 = vsyncadd [#allocation4], %s358
      %s360 = sshll.u32 [#allocation3], 4
      %s361 = int_to_ptr.vmem [resolvable:$true] %s360
      %366 = dma.vmem_to_hbm [thread:$0]  %s361, 32, %s8, [#allocation4], 32, 32, 2
    $region37: #{actor_forward.1} parent=1 // pred_fallthru
      _
    // Predicated region
    $region38: #{actor_forward.1} parent=1 // pred_check
      _
    $region39: #{actor_forward.1} parent=1 // pred_check_branch
      %368 = sbr.rel (0) target = $region41
    $region40: #{actor_forward.1} parent=1 // pred_region
      %369 = dma.done [#allocation4], 128
    $region41: #{actor_forward.1} parent=1 // pred_fallthru
      _
    %370 = vsyncpa [#allocation4], 1

</llo_original>
